<compile_context>
chip_gen: v7x
topology: tpu7x:2x2x1
jax: 0.10.0
libtpu: 0.0.40
codegen_flags: <defaults>
</compile_context>

<pallas_src>
import functools

import jax
import jax.numpy as jnp
from jax.experimental import pallas as pl
from jax.experimental.pallas import tpu as pltpu


def _round_up(x, m):
    return ((x + m - 1) // m) * m


# --------------------------------------------------------------------------
# Fused 3x3 conv (stride 1, pad 1) + bias + ReLU on column-padded activations
# --------------------------------------------------------------------------
def _conv3x3_kernel(x_ref, above_ref, below_ref, w_ref, b_ref, o_ref,
                    *, th, wp, w_img, cin, cout):
    # x_ref:     (1, th, Wp, Cin)  bf16   rows [i*th, i*th+th)
    # above_ref: (1, 2,  Wp, Cin)  bf16   2-row block holding row i*th-1
    # below_ref: (1, 2,  Wp, Cin)  bf16   2-row block holding row i*th+th
    # w_ref:     (3, 3*Cin, Cout)  bf16   [kh, kw*Cin + c, co]
    # b_ref:     (1, Cout)         f32
    # o_ref:     (1, th, Wp, Cout) bf16   column-padded output
    i = pl.program_id(1)
    nb = pl.num_programs(1)
    dt = x_ref.dtype

    keep_above = jnp.where(i > 0, 1.0, 0.0).astype(dt)
    keep_below = jnp.where(i < nb - 1, 1.0, 0.0).astype(dt)
    row_above = above_ref[0, 1] * keep_above          # (Wp, Cin), zero at top edge
    row_below = below_ref[0, 0] * keep_below          # (Wp, Cin), zero at bottom edge
    slab = jnp.concatenate([row_above[None], x_ref[0], row_below[None]],
                           axis=0)                    # (th+2, Wp, Cin)

    # kw taps merged into K: T[t, p, kw*Cin + c] = slab[t, p + kw - 1, c]
    zcol = jnp.zeros((th + 2, 1, cin), dt)
    shift_l = jnp.concatenate([zcol, slab[:, :wp - 1, :]], axis=1)   # col p -> p-1
    shift_r = jnp.concatenate([slab[:, 1:, :], zcol], axis=1)        # col p -> p+1
    t_all = jnp.concatenate([shift_l, slab, shift_r], axis=-1)       # (th+2, Wp, 3*Cin)

    def tap(kh):
        flat = t_all[kh:kh + th].reshape(th * wp, 3 * cin)           # free (Wp % 8 == 0)
        return jnp.dot(flat, w_ref[kh], preferred_element_type=jnp.float32)

    acc = tap(0) + tap(1) + tap(2)                                   # (th*Wp, Cout) f32

    res = jnp.maximum(acc.reshape(th, wp, cout) + b_ref[...], 0.0)
    col = jax.lax.broadcasted_iota(jnp.int32, (th, wp, cout), 1)
    res = jnp.where((col >= 1) & (col <= w_img), res, 0.0)           # re-zero pad columns
    o_ref[0] = res.astype(o_ref.dtype)


def _pick_th(h, wp, cout, cap=600_000):
    """Largest even divisor of h keeping th*Wp*Cout (f32 acc elems) bounded."""
    assert h % 2 == 0
    best = 2
    for t in range(2, h + 1, 2):
        if h % t == 0 and t * wp * cout <= cap:
            best = t
    return best


def conv3x3_relu(x, w, bias, w_img, *, th=None):
    """x: (B, H, Wp, Cin) bf16 column-padded; w: (3, 3*Cin, Cout) bf16;
    bias: (1, Cout) f32.  Returns (B, H, Wp, Cout) bf16, column-padded."""
    B, H, Wp, Cin = x.shape
    Cout = w.shape[-1]
    if th is None:
        th = _pick_th(H, Wp, Cout)
    nb = H // th
    hb = th // 2                       # halo blocks are 2 rows tall
    last_hblk = H // 2 - 1

    kern = functools.partial(_conv3x3_kernel, th=th, wp=Wp, w_img=w_img,
                             cin=Cin, cout=Cout)
    return pl.pallas_call(
        kern,
        out_shape=jax.ShapeDtypeStruct((B, H, Wp, Cout), jnp.bfloat16),
        grid_spec=pltpu.PrefetchScalarGridSpec(
            num_scalar_prefetch=0,
            grid=(B, nb),
            in_specs=[
                pl.BlockSpec((1, th, Wp, Cin), lambda b, i: (b, i, 0, 0)),
                pl.BlockSpec((1, 2, Wp, Cin),
                             lambda b, i: (b, jnp.maximum(i * hb - 1, 0), 0, 0)),
                pl.BlockSpec((1, 2, Wp, Cin),
                             lambda b, i: (b, jnp.minimum((i + 1) * hb, last_hblk),
                                           0, 0)),
                pl.BlockSpec((3, 3 * Cin, Cout), lambda b, i: (0, 0, 0)),
                pl.BlockSpec((1, Cout), lambda b, i: (0, 0)),
            ],
            out_specs=pl.BlockSpec((1, th, Wp, Cout), lambda b, i: (b, i, 0, 0)),
        ),
        compiler_params=pltpu.CompilerParams(
            dimension_semantics=("parallel", "parallel"),
            vmem_limit_bytes=48 * 1024 * 1024),
    )(x, x, x, w, bias)


# --------------------------------------------------------------------------
# 2x2/2 max-pool on column-padded activations (output stays column-padded)
# --------------------------------------------------------------------------
def _maxpool_kernel(x_ref, o_ref, *, th2, wp_in, wp_out):
    c = x_ref.shape[-1]
    x = x_ref[0]                                           # (2*th2, Wp_in, C)
    rm = jnp.max(x.reshape(th2, 2, wp_in, c), axis=1)      # row-pair max
    pairs = rm.reshape(th2, wp_in // 2, 2, c)
    even = pairs[:, :, 0, :]                               # rm[:, 2q]
    odd = pairs[:, :, 1, :]                                # rm[:, 2q+1]
    zc = jnp.zeros((th2, 1, c), rm.dtype)
    odd_sr = jnp.concatenate([zc, odd[:, :wp_in // 2 - 1, :]], axis=1)  # rm[:, 2q-1]
    pooled = jnp.maximum(even, odd_sr)                     # padded output col q
    half = wp_in // 2
    if wp_out <= half:
        out = pooled[:, :wp_out, :]
    else:
        out = jnp.concatenate(
            [pooled, jnp.zeros((th2, wp_out - half, c), pooled.dtype)], axis=1)
    o_ref[0] = out


def _pick_pool_th(h2, wp_in, c, cap_bytes=2_000_000):
    best = 1
    for t in range(1, h2 + 1):
        if h2 % t == 0 and 4 * t * wp_in * c <= cap_bytes:
            best = t
    return best


def maxpool2x2(x, w_img):
    B, H, Wp_in, C = x.shape
    H2 = H // 2
    w_out = w_img // 2
    Wp_out = _round_up(w_out + 2, 8)
    th2 = _pick_pool_th(H2, Wp_in, C)

    kern = functools.partial(_maxpool_kernel, th2=th2, wp_in=Wp_in, wp_out=Wp_out)
    return pl.pallas_call(
        kern,
        out_shape=jax.ShapeDtypeStruct((B, H2, Wp_out, C), x.dtype),
        grid_spec=pltpu.PrefetchScalarGridSpec(
            num_scalar_prefetch=0,
            grid=(B, H2 // th2),
            in_specs=[pl.BlockSpec((1, 2 * th2, Wp_in, C),
                                   lambda b, i: (b, i, 0, 0))],
            out_specs=pl.BlockSpec((1, th2, Wp_out, C), lambda b, i: (b, i, 0, 0)),
        ),
        compiler_params=pltpu.CompilerParams(
            dimension_semantics=("parallel", "parallel"),
            vmem_limit_bytes=32 * 1024 * 1024),
    )(x)


# --------------------------------------------------------------------------
# Fully-connected: out = relu(a @ w + bias), f32 accumulation in o_ref
# --------------------------------------------------------------------------
def _fc_kernel(a_ref, w_ref, b_ref, o_ref, *, apply_relu):
    @pl.when(pl.program_id(2) == 0)
    def _init():
        o_ref[...] = jnp.zeros_like(o_ref)

    o_ref[...] += jnp.dot(a_ref[...], w_ref[...],
                          preferred_element_type=jnp.float32)

    @pl.when(pl.program_id(2) == pl.num_programs(2) - 1)
    def _finalize():
        out = o_ref[...] + b_ref[...]
        if apply_relu:
            out = jnp.maximum(out, 0.0)
        o_ref[...] = out


def _pick_tile(dim, cap, mult=128):
    if dim <= cap:
        return dim
    best = dim
    for t in range(mult, cap + 1, mult):
        if dim % t == 0:
            best = t
    return best


def linear_bias_relu(a, w, bias, *, apply_relu, tk_cap=3584, tn_cap=2048):
    """a: (M, K) bf16; w: (K, N) bf16; bias: (N,) f32 -> (M, N) f32."""
    M, K = a.shape
    _, N = w.shape
    tm = M
    tk = _pick_tile(K, tk_cap)
    tn = _pick_tile(N, tn_cap)
    grid = (M // tm, N // tn, K // tk)
    bias2 = bias.reshape(1, N).astype(jnp.float32)

    return pl.pallas_call(
        functools.partial(_fc_kernel, apply_relu=apply_relu),
        out_shape=jax.ShapeDtypeStruct((M, N), jnp.float32),
        grid_spec=pltpu.PrefetchScalarGridSpec(
            num_scalar_prefetch=0,
            grid=grid,
            in_specs=[
                pl.BlockSpec((tm, tk), lambda i, j, k: (i, k)),
                pl.BlockSpec((tk, tn), lambda i, j, k: (k, j)),
                pl.BlockSpec((1, tn), lambda i, j, k: (0, j)),
            ],
            out_specs=pl.BlockSpec((tm, tn), lambda i, j, k: (i, j)),
        ),
        compiler_params=pltpu.CompilerParams(
            dimension_semantics=("parallel", "parallel", "arbitrary"),
            vmem_limit_bytes=40 * 1024 * 1024),
    )(a, w, bias2)


# --------------------------------------------------------------------------
# Model
# --------------------------------------------------------------------------
VGG16_CFG = [64, 64, 'M', 128, 128, 'M', 256, 256, 256, 'M',
             512, 512, 512, 'M', 512, 512, 512, 'M']


def _pack_conv_weight(w):
    """torch (Cout, Cin, KH, KW) -> (KH, KW*Cin, Cout) bf16 (kw taps in K)."""
    cout, cin, kh, kw = w.shape
    return jnp.transpose(w, (2, 3, 1, 0)).reshape(kh, kw * cin, cout).astype(jnp.bfloat16)


def init_params(key):
    params = {'convs': [], 'fcs': []}
    cin = 3
    for v in VGG16_CFG:
        if v == 'M':
            continue
        key, k1, k2 = jax.random.split(key, 3)
        w = jax.random.normal(k1, (v, cin, 3, 3), jnp.float32) * jnp.sqrt(2.0 / (cin * 9))
        b = jax.random.normal(k2, (v,), jnp.float32) * 0.01
        params['convs'].append((_pack_conv_weight(w),
                                b.reshape(1, v).astype(jnp.float32)))
        cin = v
    # classifier[:-1]: Linear(25088,4096), ReLU, Dropout, Linear(4096,4096), ReLU, Dropout
    for din, dout in [(512 * 7 * 7, 4096), (4096, 4096)]:
        key, k1, k2 = jax.random.split(key, 3)
        w = (jax.random.normal(k1, (din, dout), jnp.float32)
             * jnp.sqrt(2.0 / din)).astype(jnp.bfloat16)
        b = jax.random.normal(k2, (dout,), jnp.float32) * 0.01
        params['fcs'].append((w, b))
    params['s'] = jnp.float32(10.0)   # nn.Parameter([10]); unused in forward
    return params


def vgg_base_no_neck_forward(params, x_nchw):
    x = jnp.transpose(x_nchw, (0, 2, 3, 1)).astype(jnp.bfloat16)   # NCHW -> NHWC bf16
    B, H, W, _ = x.shape
    wp = _round_up(W + 2, 8)
    # one cheap pad of the 3-channel image into the column-padded layout
    x = jnp.pad(x, ((0, 0), (0, 0), (1, wp - W - 1), (0, 0)))
    w_img = W
    ci = 0
    for v in VGG16_CFG:
        if v == 'M':
            x = maxpool2x2(x, w_img)
            w_img //= 2
        else:
            wk, b = params['convs'][ci]
            x = conv3x3_relu(x, wk, b, w_img)
            ci += 1
    # strip column padding; PyTorch x.view(B, 7*7*512) flattens NCHW order
    feat = x[:, :, 1:1 + w_img, :]                                  # (B, 7, 7, 512)
    feat = jnp.transpose(feat, (0, 3, 1, 2)).reshape(B, 512 * 7 * 7)
    w1, b1 = params['fcs'][0]
    h1 = linear_bias_relu(feat, w1, b1, apply_relu=True)
    w2, b2 = params['fcs'][1]
    out = linear_bias_relu(h1.astype(jnp.bfloat16), w2, b2, apply_relu=True)
    return out   # Dropouts are identity (eval); classifier[:-1] ends here


# --------------------------------------------------------------------------
# Small-shape self-checks of each kernel against pure-JAX references
# --------------------------------------------------------------------------
def _self_test(key):
    ks = jax.random.split(key, 8)

    # conv: th=4 forces multiple row blocks (interior + boundary halos)
    B, H, W, Cin, Cout = 1, 16, 12, 8, 16
    x = jax.random.normal(ks[0], (B, H, W, Cin), jnp.float32)
    w = jax.random.normal(ks[1], (Cout, Cin, 3, 3), jnp.float32) * 0.2
    b = jax.random.normal(ks[2], (Cout,), jnp.float32) * 0.1
    xb = x.astype(jnp.bfloat16)
    wp = _round_up(W + 2, 8)
    xpad = jnp.pad(xb, ((0, 0), (0, 0), (1, wp - W - 1), (0, 0)))
    got = conv3x3_relu(xpad, _pack_conv_weight(w), b.reshape(1, -1), W, th=4)
    ref = jax.lax.conv_general_dilated(
        xb.astype(jnp.float32),
        jnp.transpose(w.astype(jnp.bfloat16).astype(jnp.float32), (2, 3, 1, 0)),
        (1, 1), 'SAME', dimension_numbers=('NHWC', 'HWIO', 'NHWC'))
    ref = jnp.maximum(ref + b.reshape(1, 1, 1, -1), 0.0)
    ref = ref.astype(jnp.bfloat16).astype(jnp.float32)
    gd = got[:, :, 1:1 + W, :].astype(jnp.float32)
    err = float(jnp.max(jnp.abs(gd - ref) / (1.0 + jnp.abs(ref))))
    assert err < 0.02, f"conv3x3 self-test max rel err {err}"
    assert bool(jnp.all(got[:, :, 0, :] == 0))
    assert bool(jnp.all(got[:, :, W + 1:, :] == 0))

    # maxpool: exercises both output-width paths (slice / zero-extend)
    for hp, wd, cp in [(8, 10, 16), (4, 4, 8)]:
        p = jax.random.normal(ks[3], (1, hp, wd, cp), jnp.float32).astype(jnp.bfloat16)
        wpi = _round_up(wd + 2, 8)
        ppad = jnp.pad(p, ((0, 0), (0, 0), (1, wpi - wd - 1), (0, 0)))
        gp = maxpool2x2(ppad, wd)
        refp = p.reshape(1, hp // 2, 2, wd // 2, 2, cp).max(axis=(2, 4))
        assert bool(jnp.all(gp[:, :, 1:1 + wd // 2, :] == refp)), "maxpool self-test"

    # FC: exercises the K-accumulate and N tiling
    a = jax.random.normal(ks[4], (2, 256), jnp.float32).astype(jnp.bfloat16)
    wf = (jax.random.normal(ks[5], (256, 256), jnp.float32) * 0.05).astype(jnp.bfloat16)
    bf = jax.random.normal(ks[6], (256,), jnp.float32) * 0.1
    gf = linear_bias_relu(a, wf, bf, apply_relu=True, tk_cap=128, tn_cap=128)
    rf = jnp.maximum(a.astype(jnp.float32) @ wf.astype(jnp.float32) + bf, 0.0)
    errf = float(jnp.max(jnp.abs(gf - rf)))
    assert errf < 0.02, f"fc self-test max err {errf}"


if __name__ == "__main__":
    key = jax.random.PRNGKey(0)
    kp, kx, kt = jax.random.split(key, 3)

    _self_test(kt)

    params = init_params(kp)
    # VGG16's view(B, 7*7*512) requires 3x224x224 inputs (224 / 2^5 = 7).
    x = jax.random.normal(kx, (2, 3, 224, 224), jnp.float32)

    fwd = jax.jit(vgg_base_no_neck_forward)
    out = jax.block_until_ready(fwd(params, x))
    assert out.shape == (2, 4096), out.shape
    assert bool(jnp.all(jnp.isfinite(out)))
    print("KERNEL_OK")
</pallas_src>

<mosaic_0001>
module attributes {stable_mosaic.version = 11 : i64} {
  func.func @_conv3x3_kernel(%arg0: i32, %arg1: i32, %arg2: memref<1x4x16x8xbf16, #tpu.memory_space<vmem>>, %arg3: memref<1x2x16x8xbf16, #tpu.memory_space<vmem>>, %arg4: memref<1x2x16x8xbf16, #tpu.memory_space<vmem>>, %arg5: memref<3x24x16xbf16, #tpu.memory_space<vmem>>, %arg6: memref<1x16xf32, #tpu.memory_space<vmem>>, %arg7: memref<1x4x16x16xbf16, #tpu.memory_space<vmem>>) attributes {dimension_semantics = [#tpu.dimension_semantics<parallel>, #tpu.dimension_semantics<parallel>], iteration_bounds = array<i64: 1, 4>, scalar_prefetch = 0 : i64, scratch_operands = 0 : i64, tpu.core_type = #tpu.core_type<tc>, window_params = [{transform_indices = @transform_0, window_bounds = array<i64: 1, 4, 16, 8>}, {transform_indices = @transform_1, window_bounds = array<i64: 1, 2, 16, 8>}, {transform_indices = @transform_2, window_bounds = array<i64: 1, 2, 16, 8>}, {pipeline_mode = #tpu.pipeline_mode<synchronous>, transform_indices = @transform_3, window_bounds = array<i64: 3, 24, 16>}, {pipeline_mode = #tpu.pipeline_mode<synchronous>, transform_indices = @transform_4, window_bounds = array<i64: 1, 16>}, {transform_indices = @transform_5, window_bounds = array<i64: 1, 4, 16, 16>}]} {
    %c0_i32 = arith.constant 0 : i32
    %0 = arith.cmpi sgt, %arg1, %c0_i32 : i32
    %cst = arith.constant 1.000000e+00 : f32
    %cst_0 = arith.constant 0.000000e+00 : f32
    %1 = arith.select %0, %cst, %cst_0 : f32
    %2 = arith.truncf %1 : f32 to bf16
    %c3_i32 = arith.constant 3 : i32
    %3 = arith.cmpi slt, %arg1, %c3_i32 : i32
    %cst_1 = arith.constant 1.000000e+00 : f32
    %cst_2 = arith.constant 0.000000e+00 : f32
    %4 = arith.select %3, %cst_1, %cst_2 : f32
    %5 = arith.truncf %4 : f32 to bf16
    %c0 = arith.constant 0 : index
    %c1 = arith.constant 1 : index
    %c0_3 = arith.constant 0 : index
    %c0_4 = arith.constant 0 : index
    %6 = vector.load %arg3[%c0, %c1, %c0_3, %c0_4] : memref<1x2x16x8xbf16, #tpu.memory_space<vmem>>, vector<1x1x16x8xbf16>
    %7 = vector.shape_cast %6 : vector<1x1x16x8xbf16> to vector<16x8xbf16>
    %8 = vector.broadcast %2 : bf16 to vector<16x8xbf16>
    %9 = arith.mulf %7, %8 : vector<16x8xbf16>
    %c0_5 = arith.constant 0 : index
    %c0_6 = arith.constant 0 : index
    %c0_7 = arith.constant 0 : index
    %c0_8 = arith.constant 0 : index
    %10 = vector.load %arg4[%c0_5, %c0_6, %c0_7, %c0_8] : memref<1x2x16x8xbf16, #tpu.memory_space<vmem>>, vector<1x1x16x8xbf16>
    %11 = vector.shape_cast %10 : vector<1x1x16x8xbf16> to vector<16x8xbf16>
    %12 = vector.broadcast %5 : bf16 to vector<16x8xbf16>
    %13 = arith.mulf %11, %12 : vector<16x8xbf16>
    %14 = vector.shape_cast %9 : vector<16x8xbf16> to vector<1x16x8xbf16>
    %c0_9 = arith.constant 0 : index
    %c0_10 = arith.constant 0 : index
    %c0_11 = arith.constant 0 : index
    %c0_12 = arith.constant 0 : index
    %15 = vector.load %arg2[%c0_9, %c0_10, %c0_11, %c0_12] : memref<1x4x16x8xbf16, #tpu.memory_space<vmem>>, vector<1x4x16x8xbf16>
    %16 = vector.shape_cast %15 : vector<1x4x16x8xbf16> to vector<4x16x8xbf16>
    %17 = vector.shape_cast %13 : vector<16x8xbf16> to vector<1x16x8xbf16>
    %18 = tpu.concatenate %14, %16, %17 in 0 : vector<1x16x8xbf16>, vector<4x16x8xbf16>, vector<1x16x8xbf16> -> vector<6x16x8xbf16>
    %cst_13 = arith.constant 0.000000e+00 : bf16
    %19 = vector.broadcast %cst_13 : bf16 to vector<6x1x8xbf16>
    %20 = vector.extract_strided_slice %18 {offsets = [0, 0, 0], sizes = [6, 15, 8], strides = [1, 1, 1]} : vector<6x16x8xbf16> to vector<6x15x8xbf16>
    %21 = tpu.concatenate %19, %20 in 1 : vector<6x1x8xbf16>, vector<6x15x8xbf16> -> vector<6x16x8xbf16>
    %22 = vector.extract_strided_slice %18 {offsets = [0, 1, 0], sizes = [6, 15, 8], strides = [1, 1, 1]} : vector<6x16x8xbf16> to vector<6x15x8xbf16>
    %23 = tpu.concatenate %22, %19 in 1 : vector<6x15x8xbf16>, vector<6x1x8xbf16> -> vector<6x16x8xbf16>
    %24 = tpu.concatenate %21, %18, %23 in 2 : vector<6x16x8xbf16>, vector<6x16x8xbf16>, vector<6x16x8xbf16> -> vector<6x16x24xbf16>
    %25 = vector.extract_strided_slice %24 {offsets = [0, 0, 0], sizes = [4, 16, 24], strides = [1, 1, 1]} : vector<6x16x24xbf16> to vector<4x16x24xbf16>
    %26 = vector.shape_cast %25 : vector<4x16x24xbf16> to vector<64x24xbf16>
    %c0_14 = arith.constant 0 : index
    %c0_15 = arith.constant 0 : index
    %c0_16 = arith.constant 0 : index
    %27 = vector.load %arg5[%c0_14, %c0_15, %c0_16] : memref<3x24x16xbf16, #tpu.memory_space<vmem>>, vector<1x24x16xbf16>
    %28 = vector.shape_cast %27 : vector<1x24x16xbf16> to vector<24x16xbf16>
    %cst_17 = arith.constant dense<0.000000e+00> : vector<64x16xf32>
    %29 = tpu.matmul %26, %28, %cst_17 {dimension_numbers = #tpu.dot_dimension_numbers<[1], [0], [0], [1], [0, 0, 1, 1], [], []>} : vector<64x24xbf16>, vector<24x16xbf16>, vector<64x16xf32> -> vector<64x16xf32>
    %30 = vector.extract_strided_slice %24 {offsets = [1, 0, 0], sizes = [4, 16, 24], strides = [1, 1, 1]} : vector<6x16x24xbf16> to vector<4x16x24xbf16>
    %31 = vector.shape_cast %30 : vector<4x16x24xbf16> to vector<64x24xbf16>
    %c1_18 = arith.constant 1 : index
    %c0_19 = arith.constant 0 : index
    %c0_20 = arith.constant 0 : index
    %32 = vector.load %arg5[%c1_18, %c0_19, %c0_20] : memref<3x24x16xbf16, #tpu.memory_space<vmem>>, vector<1x24x16xbf16>
    %33 = vector.shape_cast %32 : vector<1x24x16xbf16> to vector<24x16xbf16>
    %cst_21 = arith.constant dense<0.000000e+00> : vector<64x16xf32>
    %34 = tpu.matmul %31, %33, %cst_21 {dimension_numbers = #tpu.dot_dimension_numbers<[1], [0], [0], [1], [0, 0, 1, 1], [], []>} : vector<64x24xbf16>, vector<24x16xbf16>, vector<64x16xf32> -> vector<64x16xf32>
    %35 = arith.addf %29, %34 : vector<64x16xf32>
    %36 = vector.extract_strided_slice %24 {offsets = [2, 0, 0], sizes = [4, 16, 24], strides = [1, 1, 1]} : vector<6x16x24xbf16> to vector<4x16x24xbf16>
    %37 = vector.shape_cast %36 : vector<4x16x24xbf16> to vector<64x24xbf16>
    %c2 = arith.constant 2 : index
    %c0_22 = arith.constant 0 : index
    %c0_23 = arith.constant 0 : index
    %38 = vector.load %arg5[%c2, %c0_22, %c0_23] : memref<3x24x16xbf16, #tpu.memory_space<vmem>>, vector<1x24x16xbf16>
    %39 = vector.shape_cast %38 : vector<1x24x16xbf16> to vector<24x16xbf16>
    %cst_24 = arith.constant dense<0.000000e+00> : vector<64x16xf32>
    %40 = tpu.matmul %37, %39, %cst_24 {dimension_numbers = #tpu.dot_dimension_numbers<[1], [0], [0], [1], [0, 0, 1, 1], [], []>} : vector<64x24xbf16>, vector<24x16xbf16>, vector<64x16xf32> -> vector<64x16xf32>
    %41 = arith.addf %35, %40 : vector<64x16xf32>
    %42 = vector.shape_cast %41 : vector<64x16xf32> to vector<4x16x16xf32>
    %c0_25 = arith.constant 0 : index
    %c0_26 = arith.constant 0 : index
    %43 = vector.load %arg6[%c0_25, %c0_26] : memref<1x16xf32, #tpu.memory_space<vmem>>, vector<1x16xf32>
    %44 = vector.shape_cast %43 : vector<1x16xf32> to vector<1x1x16xf32>
    %45 = vector.broadcast %44 : vector<1x1x16xf32> to vector<4x16x16xf32>
    %46 = arith.addf %42, %45 : vector<4x16x16xf32>
    %cst_27 = arith.constant 0.000000e+00 : f32
    %47 = vector.broadcast %cst_27 : f32 to vector<4x16x16xf32>
    %48 = arith.maximumf %46, %47 : vector<4x16x16xf32>
    %49 = tpu.iota {dimensions = array<i32: 1>} : vector<4x16x16xi32>
    %c1_i32 = arith.constant 1 : i32
    %50 = vector.broadcast %c1_i32 : i32 to vector<4x16x16xi32>
    %51 = arith.cmpi sge, %49, %50 : vector<4x16x16xi32>
    %c12_i32 = arith.constant 12 : i32
    %52 = vector.broadcast %c12_i32 : i32 to vector<4x16x16xi32>
    %53 = arith.cmpi sle, %49, %52 : vector<4x16x16xi32>
    %54 = arith.andi %51, %53 : vector<4x16x16xi1>
    %cst_28 = arith.constant 0.000000e+00 : f32
    %55 = vector.broadcast %cst_28 : f32 to vector<4x16x16xf32>
    %56 = arith.select %54, %48, %55 : vector<4x16x16xi1>, vector<4x16x16xf32>
    %57 = arith.truncf %56 : vector<4x16x16xf32> to vector<4x16x16xbf16>
    %c0_29 = arith.constant 0 : index
    %c0_30 = arith.constant 0 : index
    %c0_31 = arith.constant 0 : index
    %c0_32 = arith.constant 0 : index
    %58 = vector.load %arg7[%c0_29, %c0_30, %c0_31, %c0_32] : memref<1x4x16x16xbf16, #tpu.memory_space<vmem>>, vector<1x4x16x16xbf16>
    %59 = vector.shape_cast %58 : vector<1x4x16x16xbf16> to vector<4x16x16xbf16>
    %60 = vector.shape_cast %57 : vector<4x16x16xbf16> to vector<1x4x16x16xbf16>
    tpu.vector_store %arg7[%c0_29, %c0_30, %c0_31, %c0_32], %60 {strides = array<i32>} : memref<1x4x16x16xbf16, #tpu.memory_space<vmem>>, vector<1x4x16x16xbf16>,
    return
  }
  func.func @transform_0(%arg0: i32, %arg1: i32) -> (i32, i32, i32, i32) {
    %c0_i32 = arith.constant 0 : i32
    %c0_i32_0 = arith.constant 0 : i32
    %c0_i32_1 = arith.constant 0 : i32
    return %arg0, %arg1, %c0_i32, %c0_i32_0 : i32, i32, i32, i32
  }
  func.func @transform_1(%arg0: i32, %arg1: i32) -> (i32, i32, i32, i32) {
    %c2_i32 = arith.constant 2 : i32
    %0 = arith.muli %arg1, %c2_i32 : i32
    %c1_i32 = arith.constant 1 : i32
    %1 = arith.subi %0, %c1_i32 : i32
    %c0_i32 = arith.constant 0 : i32
    %2 = arith.maxsi %1, %c0_i32 : i32
    %c0_i32_0 = arith.constant 0 : i32
    %c0_i32_1 = arith.constant 0 : i32
    %c0_i32_2 = arith.constant 0 : i32
    return %arg0, %2, %c0_i32_0, %c0_i32_1 : i32, i32, i32, i32
  }
  func.func @transform_2(%arg0: i32, %arg1: i32) -> (i32, i32, i32, i32) {
    %c1_i32 = arith.constant 1 : i32
    %0 = arith.addi %arg1, %c1_i32 : i32
    %c2_i32 = arith.constant 2 : i32
    %1 = arith.muli %0, %c2_i32 : i32
    %c7_i32 = arith.constant 7 : i32
    %2 = arith.minsi %1, %c7_i32 : i32
    %c0_i32 = arith.constant 0 : i32
    %c0_i32_0 = arith.constant 0 : i32
    %c0_i32_1 = arith.constant 0 : i32
    return %arg0, %2, %c0_i32, %c0_i32_0 : i32, i32, i32, i32
  }
  func.func @transform_3(%arg0: i32, %arg1: i32) -> (i32, i32, i32) {
    %c0_i32 = arith.constant 0 : i32
    %c0_i32_0 = arith.constant 0 : i32
    %c0_i32_1 = arith.constant 0 : i32
    %c0_i32_2 = arith.constant 0 : i32
    return %c0_i32, %c0_i32_0, %c0_i32_1 : i32, i32, i32
  }
  func.func @transform_4(%arg0: i32, %arg1: i32) -> (i32, i32) {
    %c0_i32 = arith.constant 0 : i32
    %c0_i32_0 = arith.constant 0 : i32
    %c0_i32_1 = arith.constant 0 : i32
    return %c0_i32, %c0_i32_0 : i32, i32
  }
  func.func @transform_5(%arg0: i32, %arg1: i32) -> (i32, i32, i32, i32) {
    %c0_i32 = arith.constant 0 : i32
    %c0_i32_0 = arith.constant 0 : i32
    %c0_i32_1 = arith.constant 0 : i32
    return %arg0, %arg1, %c0_i32, %c0_i32_0 : i32, i32, i32, i32
  }
}

</mosaic_0001>

<llo_original>
// kernel: tpu_custom_call.1
$region0: #{tpu_custom_call.1}
  #allocation0 [shape = 'u32[]', space=smem, size = 0x4, offset = 0x4, fixed_abs, tag = 'smem constant byte address 0x4 - core index']
  #allocation1 [shape = 'u32[144,128]{1,0:T(1,128)}', space=vmem, size = 0x12000, scoped, tag = 'internal scratch']
  %s0 = inlined_call_operand.vmem [shape: bf16[1,16,16,8], index: 0, kind: input, shape index: {}]
  %s1 = inlined_call_operand.vmem [shape: bf16[1,16,16,8], index: 1, kind: input, shape index: {}]
  %s2 = inlined_call_operand.vmem [shape: bf16[1,16,16,8], index: 2, kind: input, shape index: {}]
  %s3 = inlined_call_operand.vmem [shape: bf16[3,24,16], index: 3, kind: input, shape index: {}]
  %s4 = inlined_call_operand.vmem [shape: f32[1,16], index: 4, kind: input, shape index: {}]
  %s5 = inlined_call_operand.hbm [shape: bf16[1,16,16,16], index: 5, kind: output, shape index: {}]
  %s6 = sld [smem:[#allocation0]]
  $region53: #{tpu_custom_call.1} parent=0
    _
  %s8 = ssub.s32 1, %s6
  %s9 = scalar_select 0, %s8, %s6
  $region1: #{tpu_custom_call.1} parent=0
    #allocation2 [shape = 'u8[32768]{0}', space=vmem, size = 0x8000, scoped, tag = 'output window, operand 0']
    #allocation3 [shape = 's32[2]{0}', space=sflag, size = 0x8, scoped, tag = 'scoped memory for tpu_custom_call.1']
    %10 = vsyncpa [#allocation3], 0
    %s11 = scalar_lea.sflag [#allocation3], 1
    %12 = vsyncpa %s11, 0
    loop: start=0, step=1, limit=6
    $region2: #{tpu_custom_call.1} parent=1 // loop_pre_header
      _
    $region3: #{tpu_custom_call.1} parent=1 // loop_header
      %s14 = sphi 0, %s18
      %p15 = scmp.ge.s32.totalorder %s14, 6
      %s21 = sphi 0, %s33
      %s22 = sphi 0, %s29
      %s23 = sphi 0, %s21
      %s24 = sphi 0, %s22
      %s25 = sphi 0, %s23
      %s26 = sphi 0, %s24
      %s38 = sphi 0, %s40
      %s41 = sphi 0, %s38
      %s42 = sphi 0, %s41
      %s58 = sphi 0, %s42
      %s74 = sphi 0, %s76
      %s77 = sphi 0, %s74
      %s78 = sphi 0, %s77
      %s94 = sphi 0, %s78
      %s110 = sphi 0, %s112
      %s113 = sphi 0, %s110
      %s114 = sphi 0, %s113
      %s130 = sphi 0, %s114
      %s134 = sphi 0, %s134
      %s136 = sphi 0, %s134
      %s137 = sphi 0, %s136
      %s151 = sphi 0, %s137
      %s155 = sphi 0, %s155
      %s157 = sphi 0, %s155
      %s158 = sphi 0, %s157
      %s172 = sphi 0, %s158
      %s180 = sphi 0, %s182
      %s183 = sphi 0, %s180
      %s184 = sphi 0, %s183
      %s200 = sphi 0, %s184
    $region4: #{tpu_custom_call.1} parent=1 // loop_header_branch
      %17 = sbr.rel (%p15) target = $region8
    $region5: #{tpu_custom_call.1} parent=1 // loop_body
      %s19 = ssub.s32 %s14, 1
      %s20 = ssub.s32 %s14, 2
      %s27 = sadd.s32 1, %s22
      %p28 = scmp.ge.s32.totalorder %s27, 4
      %s29 = scalar_select %p28, 0, %s27
      %s30 = sadd.s32 1, %s21
      %s31 = scalar_select %p28, %s30, %s21
      %p32 = scmp.ge.s32.totalorder %s31, 1
      %s33 = scalar_select %p32, 0, %s31
      %s34 = ssub.s32 %s21, %s33
      %s35 = ssub.s32 %s22, %s29
      %s36 = sor.u32 %s34, %s35
      %p37 = scmp.eq.s32.totalorder %s36, 0
      %s39 = sadd.s32 %s38, 1
      %s40 = scalar_select %p37, %s38, %s39
      %p43 = pneg %p37
      %p44 = scmp.eq.s32.totalorder %s14, 3
      %p45 = por %p43, %p44
      %p46 = scmp.ne.s32.totalorder %s38, %s41
      %p47 = scmp.eq.s32.totalorder %s14, 0
      %p48 = por %p46, %p47
      %p49 = scmp.ne.s32.totalorder %s38, %s41
      %p50 = scmp.eq.s32.totalorder %s19, 3
      %p51 = por %p49, %p50
      %p52 = scmp.ne.s32.totalorder %s41, %s42
      %p53 = scmp.eq.s32.totalorder %s19, 0
      %p54 = por %p52, %p53
      %p55 = scmp.ne.s32.totalorder %s41, %s42
      %p56 = scmp.eq.s32.totalorder %s20, 3
      %p57 = por %p55, %p56
      %p59 = scmp.ne.s32.totalorder %s42, %s58
      %p60 = scmp.eq.s32.totalorder %s20, 0
      %p61 = por %p59, %p60
      %s62 = smul.u32 %s22, 2
      %s63 = ssub.s32 %s62, 1
      %p64 = scmp.gt.s32.totalorder %s63, 0
      %s65 = scalar_select %p64, %s63, 0
      %s66 = smul.u32 %s29, 2
      %s67 = ssub.s32 %s66, 1
      %p68 = scmp.gt.s32.totalorder %s67, 0
      %s69 = scalar_select %p68, %s67, 0
      %s70 = ssub.s32 %s21, %s33
      %s71 = ssub.s32 %s65, %s69
      %s72 = sor.u32 %s70, %s71
      %p73 = scmp.eq.s32.totalorder %s72, 0
      %s75 = sadd.s32 %s74, 1
      %s76 = scalar_select %p73, %s74, %s75
      %p79 = pneg %p73
      %p80 = scmp.eq.s32.totalorder %s14, 3
      %p81 = por %p79, %p80
      %p82 = scmp.ne.s32.totalorder %s74, %s77
      %p83 = scmp.eq.s32.totalorder %s14, 0
      %p84 = por %p82, %p83
      %p85 = scmp.ne.s32.totalorder %s74, %s77
      %p86 = scmp.eq.s32.totalorder %s19, 3
      %p87 = por %p85, %p86
      %p88 = scmp.ne.s32.totalorder %s77, %s78
      %p89 = scmp.eq.s32.totalorder %s19, 0
      %p90 = por %p88, %p89
      %p91 = scmp.ne.s32.totalorder %s77, %s78
      %p92 = scmp.eq.s32.totalorder %s20, 3
      %p93 = por %p91, %p92
      %p95 = scmp.ne.s32.totalorder %s78, %s94
      %p96 = scmp.eq.s32.totalorder %s20, 0
      %p97 = por %p95, %p96
      %s98 = sadd.s32 %s22, 1
      %s99 = smul.u32 %s98, 2
      %p100 = scmp.lt.s32.totalorder %s99, 7
      %s101 = scalar_select %p100, %s99, 7
      %s102 = sadd.s32 %s29, 1
      %s103 = smul.u32 %s102, 2
      %p104 = scmp.lt.s32.totalorder %s103, 7
      %s105 = scalar_select %p104, %s103, 7
      %s106 = ssub.s32 %s21, %s33
      %s107 = ssub.s32 %s101, %s105
      %s108 = sor.u32 %s106, %s107
      %p109 = scmp.eq.s32.totalorder %s108, 0
      %s111 = sadd.s32 %s110, 1
      %s112 = scalar_select %p109, %s110, %s111
      %p115 = pneg %p109
      %p116 = scmp.eq.s32.totalorder %s14, 3
      %p117 = por %p115, %p116
      %p118 = scmp.ne.s32.totalorder %s110, %s113
      %p119 = scmp.eq.s32.totalorder %s14, 0
      %p120 = por %p118, %p119
      %p121 = scmp.ne.s32.totalorder %s110, %s113
      %p122 = scmp.eq.s32.totalorder %s19, 3
      %p123 = por %p121, %p122
      %p124 = scmp.ne.s32.totalorder %s113, %s114
      %p125 = scmp.eq.s32.totalorder %s19, 0
      %p126 = por %p124, %p125
      %p127 = scmp.ne.s32.totalorder %s113, %s114
      %p128 = scmp.eq.s32.totalorder %s20, 3
      %p129 = por %p127, %p128
      %p131 = scmp.ne.s32.totalorder %s114, %s130
      %p132 = scmp.eq.s32.totalorder %s20, 0
      %p133 = por %p131, %p132
      %s135 = sadd.s32 %s134, 1
      %p138 = scmp.eq.s32.totalorder %s14, 3
      %p139 = scmp.ne.s32.totalorder %s134, %s136
      %p140 = scmp.eq.s32.totalorder %s14, 0
      %p141 = por %p139, %p140
      %p142 = scmp.ne.s32.totalorder %s134, %s136
      %p143 = scmp.eq.s32.totalorder %s19, 3
      %p144 = por %p142, %p143
      %p145 = scmp.ne.s32.totalorder %s136, %s137
      %p146 = scmp.eq.s32.totalorder %s19, 0
      %p147 = por %p145, %p146
      %p148 = scmp.ne.s32.totalorder %s136, %s137
      %p149 = scmp.eq.s32.totalorder %s20, 3
      %p150 = por %p148, %p149
      %p152 = scmp.ne.s32.totalorder %s137, %s151
      %p153 = scmp.eq.s32.totalorder %s20, 0
      %p154 = por %p152, %p153
      %s156 = sadd.s32 %s155, 1
      %p159 = scmp.eq.s32.totalorder %s14, 3
      %p160 = scmp.ne.s32.totalorder %s155, %s157
      %p161 = scmp.eq.s32.totalorder %s14, 0
      %p162 = por %p160, %p161
      %p163 = scmp.ne.s32.totalorder %s155, %s157
      %p164 = scmp.eq.s32.totalorder %s19, 3
      %p165 = por %p163, %p164
      %p166 = scmp.ne.s32.totalorder %s157, %s158
      %p167 = scmp.eq.s32.totalorder %s19, 0
      %p168 = por %p166, %p167
      %p169 = scmp.ne.s32.totalorder %s157, %s158
      %p170 = scmp.eq.s32.totalorder %s20, 3
      %p171 = por %p169, %p170
      %p173 = scmp.ne.s32.totalorder %s158, %s172
      %p174 = scmp.eq.s32.totalorder %s20, 0
      %p175 = por %p173, %p174
      %s176 = ssub.s32 %s21, %s33
      %s177 = ssub.s32 %s22, %s29
      %s178 = sor.u32 %s176, %s177
      %p179 = scmp.eq.s32.totalorder %s178, 0
      %s181 = sadd.s32 %s180, 1
      %s182 = scalar_select %p179, %s180, %s181
      %p185 = pneg %p179
      %p186 = scmp.eq.s32.totalorder %s14, 3
      %p187 = por %p185, %p186
      %p188 = scmp.ne.s32.totalorder %s180, %s183
      %p189 = scmp.eq.s32.totalorder %s14, 0
      %p190 = por %p188, %p189
      %p191 = scmp.ne.s32.totalorder %s180, %s183
      %p192 = scmp.eq.s32.totalorder %s19, 3
      %p193 = por %p191, %p192
      %p194 = scmp.ne.s32.totalorder %s183, %s184
      %p195 = scmp.eq.s32.totalorder %s19, 0
      %p196 = por %p194, %p195
      %p197 = scmp.ne.s32.totalorder %s183, %s184
      %p198 = scmp.eq.s32.totalorder %s20, 3
      %p199 = por %p197, %p198
      %p201 = scmp.ne.s32.totalorder %s184, %s200
      %p202 = scmp.eq.s32.totalorder %s20, 0
      %p203 = por %p201, %p202
      %p204 = scmp.le.s32.totalorder 1, %s14
      %p205 = scmp.lt.s32.totalorder %s14, 5
      %p206 = pnand %p204, %p205
      %p207 = pneg %p206
      // Predicated region
      $region9: #{tpu_custom_call.1} parent=5 // pred_check
        _
      $region10: #{tpu_custom_call.1} parent=5 // pred_check_branch
        %209 = sbr.rel (%p206) target = $region12
      $region11: #{tpu_custom_call.1} parent=5 // pred_region
        %s210 = ssub.s32 %s14, 1
        // Predicated region
        $region13: #{tpu_custom_call.1} parent=11 // pred_check
          %p211 = pneg %p147
        $region14: #{tpu_custom_call.1} parent=11 // pred_check_branch
          %213 = sbr.rel (%p211) target = $region16
        $region15: #{tpu_custom_call.1} parent=11 // pred_region
          _
        $region16: #{tpu_custom_call.1} parent=11 // pred_fallthru
          _
        // Predicated region
        $region17: #{tpu_custom_call.1} parent=11 // pred_check
          %p214 = pneg %p168
        $region18: #{tpu_custom_call.1} parent=11 // pred_check_branch
          %216 = sbr.rel (%p214) target = $region20
        $region19: #{tpu_custom_call.1} parent=11 // pred_region
          _
        $region20: #{tpu_custom_call.1} parent=11 // pred_fallthru
          _
      $region12: #{tpu_custom_call.1} parent=5 // pred_fallthru
        _
      %p217 = scmp.lt.s32.totalorder %s14, 4
      // Predicated region
      $region21: #{tpu_custom_call.1} parent=5 // pred_check
        %p218 = pneg %p217
      $region22: #{tpu_custom_call.1} parent=5 // pred_check_branch
        %220 = sbr.rel (%p218) target = $region24
      $region23: #{tpu_custom_call.1} parent=5 // pred_region
        // Predicated region
        $region25: #{tpu_custom_call.1} parent=23 // pred_check
          %p221 = pneg %p48
        $region26: #{tpu_custom_call.1} parent=23 // pred_check_branch
          %223 = sbr.rel (%p221) target = $region28
        $region27: #{tpu_custom_call.1} parent=23 // pred_region
          %s224 = smul.u32 4, %s22
          %p225 = scmp.lt.s32.totalorder %s21, 0
          %s226 = scalar_select %p225, %s21, 0
          %p227 = scmp.lt.s32.totalorder %s224, 15
          %s228 = scalar_select %p227, %s224, 15
          %s229 = smul.addr %s228, 2
          %s230 = smul.addr %s226, 32
          %s231 = sadd.s32 %s229, %s230
          %s232 = smul.addr %s231, 4
          %s233 = scalar_lea.vmem %s0, %s232
          %s234 = smul.u32 4, %s22
        $region28: #{tpu_custom_call.1} parent=23 // pred_fallthru
          _
        // Predicated region
        $region29: #{tpu_custom_call.1} parent=23 // pred_check
          %p235 = pneg %p84
        $region30: #{tpu_custom_call.1} parent=23 // pred_check_branch
          %237 = sbr.rel (%p235) target = $region32
        $region31: #{tpu_custom_call.1} parent=23 // pred_region
          %s238 = smul.u32 %s22, 2
          %s239 = ssub.s32 %s238, 1
          %p240 = scmp.gt.s32.totalorder %s239, 0
          %s241 = scalar_select %p240, %s239, 0
          %s242 = smul.u32 2, %s241
          %p243 = scmp.lt.s32.totalorder %s21, 0
          %s244 = scalar_select %p243, %s21, 0
          %p245 = scmp.lt.s32.totalorder %s242, 15
          %s246 = scalar_select %p245, %s242, 15
          %s247 = smul.addr %s246, 2
          %s248 = smul.addr %s244, 32
          %s249 = sadd.s32 %s247, %s248
          %s250 = smul.addr %s249, 4
          %s251 = scalar_lea.vmem %s1, %s250
          %s252 = smul.u32 %s22, 2
          %s253 = ssub.s32 %s252, 1
          %p254 = scmp.gt.s32.totalorder %s253, 0
          %s255 = scalar_select %p254, %s253, 0
          %s256 = smul.u32 2, %s255
        $region32: #{tpu_custom_call.1} parent=23 // pred_fallthru
          _
        // Predicated region
        $region33: #{tpu_custom_call.1} parent=23 // pred_check
          %p257 = pneg %p120
        $region34: #{tpu_custom_call.1} parent=23 // pred_check_branch
          %259 = sbr.rel (%p257) target = $region36
        $region35: #{tpu_custom_call.1} parent=23 // pred_region
          %s260 = sadd.s32 %s22, 1
          %s261 = smul.u32 %s260, 2
          %p262 = scmp.lt.s32.totalorder %s261, 7
          %s263 = scalar_select %p262, %s261, 7
          %s264 = smul.u32 2, %s263
          %p265 = scmp.lt.s32.totalorder %s21, 0
          %s266 = scalar_select %p265, %s21, 0
          %p267 = scmp.lt.s32.totalorder %s264, 15
          %s268 = scalar_select %p267, %s264, 15
          %s269 = smul.addr %s268, 2
          %s270 = smul.addr %s266, 32
          %s271 = sadd.s32 %s269, %s270
          %s272 = smul.addr %s271, 4
          %s273 = scalar_lea.vmem %s2, %s272
          %s274 = sadd.s32 %s22, 1
          %s275 = smul.u32 %s274, 2
          %p276 = scmp.lt.s32.totalorder %s275, 7
          %s277 = scalar_select %p276, %s275, 7
          %s278 = smul.u32 2, %s277
        $region36: #{tpu_custom_call.1} parent=23 // pred_fallthru
          _
      $region24: #{tpu_custom_call.1} parent=5 // pred_fallthru
        _
      %p279 = scmp.le.s32.totalorder 1, %s14
      %p280 = scmp.lt.s32.totalorder %s14, 5
      %p281 = pnand %p279, %p280
      %p282 = pneg %p281
      // Predicated region
      $region37: #{tpu_custom_call.1} parent=5 // pred_check
        _
      $region38: #{tpu_custom_call.1} parent=5 // pred_check_branch
        %284 = sbr.rel (%p281) target = $region40
      $region39: #{tpu_custom_call.1} parent=5 // pred_region
        %s285 = ssub.s32 %s14, 1
        %s286 = smul.u32 4, %s24
        %p287 = scmp.lt.s32.totalorder %s23, 0
        %s288 = scalar_select %p287, %s23, 0
        %p289 = scmp.lt.s32.totalorder %s286, 15
        %s290 = scalar_select %p289, %s286, 15
        %s291 = smul.addr %s290, 2
        %s292 = smul.addr %s288, 32
        %s293 = sadd.s32 %s291, %s292
        %s294 = smul.addr %s293, 4
        %s295 = scalar_lea.vmem %s0, %s294
        %p296 = pneg %p54
        %p297 = pneg %p51
        %s298 = smul.u32 %s24, 2
        %s299 = ssub.s32 %s298, 1
        %p300 = scmp.gt.s32.totalorder %s299, 0
        %s301 = scalar_select %p300, %s299, 0
        %s302 = smul.u32 2, %s301
        %p303 = scmp.lt.s32.totalorder %s23, 0
        %s304 = scalar_select %p303, %s23, 0
        %p305 = scmp.lt.s32.totalorder %s302, 15
        %s306 = scalar_select %p305, %s302, 15
        %s307 = smul.addr %s306, 2
        %s308 = smul.addr %s304, 32
        %s309 = sadd.s32 %s307, %s308
        %s310 = smul.addr %s309, 4
        %s311 = scalar_lea.vmem %s1, %s310
        %p312 = pneg %p90
        %p313 = pneg %p87
        %s314 = sadd.s32 %s24, 1
        %s315 = smul.u32 %s314, 2
        %p316 = scmp.lt.s32.totalorder %s315, 7
        %s317 = scalar_select %p316, %s315, 7
        %s318 = smul.u32 2, %s317
        %p319 = scmp.lt.s32.totalorder %s23, 0
        %s320 = scalar_select %p319, %s23, 0
        %p321 = scmp.lt.s32.totalorder %s318, 15
        %s322 = scalar_select %p321, %s318, 15
        %s323 = smul.addr %s322, 2
        %s324 = smul.addr %s320, 32
        %s325 = sadd.s32 %s323, %s324
        %s326 = smul.addr %s325, 4
        %s327 = scalar_lea.vmem %s2, %s326
        %p328 = pneg %p126
        %p329 = pneg %p123
        %p330 = pneg %p147
        %p331 = pneg %p144
        %p332 = pneg %p168
        %p333 = pneg %p165
        %p334 = pneg %p196
        %p335 = pneg %p193
        %s336 = sand.u32 %s183, 1
        %s337 = scalar_lea.sflag [#allocation3], %s336
        %s338 = sand.u32 %s183, 1
        %s339 = smul.addr %s338, 32
        %s340 = scalar_lea.vmem [#allocation2], %s339
        %s341 = smul.u32 4, %s24
        %p342 = scmp.lt.s32.totalorder %s23, 0
        %s343 = scalar_select %p342, %s23, 0
        %p344 = scmp.lt.s32.totalorder %s341, 15
        %s345 = scalar_select %p344, %s341, 15
        %s346 = smul.addr %s345, 2
        %s347 = smul.addr %s343, 32
        %s348 = sadd.s32 %s346, %s347
        %s349 = smul.addr %s348, 4
        %s350 = scalar_lea.vmem %s0, %s349
        %s351 = smul.u32 4, %s24
        %s352 = smul.u32 %s24, 2
        %s353 = ssub.s32 %s352, 1
        %p354 = scmp.gt.s32.totalorder %s353, 0
        %s355 = scalar_select %p354, %s353, 0
        %s356 = smul.u32 2, %s355
        %p357 = scmp.lt.s32.totalorder %s23, 0
        %s358 = scalar_select %p357, %s23, 0
        %p359 = scmp.lt.s32.totalorder %s356, 15
        %s360 = scalar_select %p359, %s356, 15
        %s361 = smul.addr %s360, 2
        %s362 = smul.addr %s358, 32
        %s363 = sadd.s32 %s361, %s362
        %s364 = smul.addr %s363, 4
        %s365 = scalar_lea.vmem %s1, %s364
        %s366 = smul.u32 %s24, 2
        %s367 = ssub.s32 %s366, 1
        %p368 = scmp.gt.s32.totalorder %s367, 0
        %s369 = scalar_select %p368, %s367, 0
        %s370 = smul.u32 2, %s369
        %s371 = sadd.s32 %s24, 1
        %s372 = smul.u32 %s371, 2
        %p373 = scmp.lt.s32.totalorder %s372, 7
        %s374 = scalar_select %p373, %s372, 7
        %s375 = smul.u32 2, %s374
        %p376 = scmp.lt.s32.totalorder %s23, 0
        %s377 = scalar_select %p376, %s23, 0
        %p378 = scmp.lt.s32.totalorder %s375, 15
        %s379 = scalar_select %p378, %s375, 15
        %s380 = smul.addr %s379, 2
        %s381 = smul.addr %s377, 32
        %s382 = sadd.s32 %s380, %s381
        %s383 = smul.addr %s382, 4
        %s384 = scalar_lea.vmem %s2, %s383
        %s385 = sadd.s32 %s24, 1
        %s386 = smul.u32 %s385, 2
        %p387 = scmp.lt.s32.totalorder %s386, 7
        %s388 = scalar_select %p387, %s386, 7
        %s389 = smul.u32 2, %s388
        %s390 = smul.u32 4, %s24
        %p392 = scmp.gt.s32.totalorder %s24, 0
        %s393 = scalar_select %p392, 1.0, 0.0
        %p395 = scmp.ne.f32.partialorder %s393, %s393
        %s396 = sshrl.u32 %s393, 16
        %s397 = sand.u32 %s396, 1
        %s398 = sadd.s32 32767, %s397
        %s399 = sadd.s32 %s393, %s398
        %s400 = sand.u32 %s399, 4294901760
        %s401 = scalar_select %p395, 2143289344, %s400
        %s403 = sshrl.u32 %s401, 16
        %p404 = scmp.lt.s32.totalorder %s24, 3
        %s405 = scalar_select %p404, 1.0, 0.0
        %p407 = scmp.ne.f32.partialorder %s405, %s405
        %s408 = sshrl.u32 %s405, 16
        %s409 = sand.u32 %s408, 1
        %s410 = sadd.s32 32767, %s409
        %s411 = sadd.s32 %s405, %s410
        %s412 = sand.u32 %s411, 4294901760
        %s413 = scalar_select %p407, 2143289344, %s412
        %s415 = sshrl.u32 %s413, 16
        %s416 = scalar_lea.vmem %s365, 8
        %v417 = vld [vmem:[%s416] sm:$0xf]
        %v418 = vld [vmem:[%s416 + $0x4] sm:$0xf]
        %s419 = sshll.u32 %s403, 16
        %s420 = sor.u32 %s403, %s419
        %v421 = vstv %s420
        %v423 = vmul.bf16 %v417, %v421
        %v424 = vmul.bf16 %v418, %v421
        %v425 = vld [vmem:[%s384] sm:$0xf]
        %v426 = vld [vmem:[%s384 + $0x4] sm:$0xf]
        %s427 = sshll.u32 %s415, 16
        %s428 = sor.u32 %s415, %s427
        %v429 = vstv %s428
        %v431 = vmul.bf16 %v425, %v429
        %v432 = vmul.bf16 %v426, %v429
        %v433 = vld [vmem:[%s350] sm:$0xf]
        %v434 = vld [vmem:[%s350 + $0x4] sm:$0xf]
        %v435 = vld [vmem:[%s350 + $0x8] sm:$0xf]
        %v436 = vld [vmem:[%s350 + $0xc] sm:$0xf]
        %v437 = vld [vmem:[%s350 + $0x10] sm:$0xf]
        %v438 = vld [vmem:[%s350 + $0x14] sm:$0xf]
        %v439 = vld [vmem:[%s350 + $0x18] sm:$0xf]
        %v440 = vld [vmem:[%s350 + $0x1c] sm:$0xf]
        %v453 = vunpack.c.l.b16 %v423
        %v454 = vunpack.c.l.b16 %v424
        %v455 = vunpack.c.l.b16 %v433
        %v456 = vunpack.c.l.b16 %v434
        %v457 = vunpack.c.l.b16 %v435
        %v458 = vunpack.c.l.b16 %v436
        %v459 = vunpack.c.l.b16 %v437
        %v460 = vunpack.c.l.b16 %v438
        %v461 = vunpack.c.l.b16 %v439
        %v462 = vunpack.c.l.b16 %v440
        %v463 = vunpack.c.l.b16 %v431
        %v464 = vunpack.c.l.b16 %v432
        %v465 = vpack.c.b16 %v454, %v453
        %v466 = vpack.c.b16 %v456, %v455
        %v467 = vpack.c.b16 %v458, %v457
        %v468 = vpack.c.b16 %v460, %v459
        %v469 = vpack.c.b16 %v462, %v461
        %v470 = vpack.c.b16 %v464, %v463
        %v472 = vshrl.u32 %v465, 16
        %v474 = vrot.slane %v472, 7
        %v475 = vshll.u32 %v465, 16
        %v477 = vor.u32 %v474, %v475
        %v479 = vshrl.u32 %v466, 16
        %v481 = vrot.slane %v479, 7
        %v482 = vshll.u32 %v466, 16
        %v484 = vor.u32 %v481, %v482
        %v486 = vshrl.u32 %v467, 16
        %v488 = vrot.slane %v486, 7
        %v489 = vshll.u32 %v467, 16
        %v491 = vor.u32 %v488, %v489
        %v493 = vshrl.u32 %v468, 16
        %v495 = vrot.slane %v493, 7
        %v496 = vshll.u32 %v468, 16
        %v498 = vor.u32 %v495, %v496
        %v500 = vshrl.u32 %v469, 16
        %v502 = vrot.slane %v500, 7
        %v503 = vshll.u32 %v469, 16
        %v505 = vor.u32 %v502, %v503
        %v507 = vshrl.u32 %v470, 16
        %v509 = vrot.slane %v507, 7
        %v510 = vshll.u32 %v470, 16
        %v512 = vor.u32 %v509, %v510
        %vm519 = vcmask 1040384
        %vm520 = vsmask.f32 256
        %vm521 = vmand %vm519, %vm520
        %v522 = vsel %vm521, 0, %v477
        %v523 = vsel %vm521, 0, %v484
        %v524 = vsel %vm521, 0, %v491
        %v525 = vsel %vm521, 0, %v498
        %v526 = vsel %vm521, 0, %v505
        %v527 = vsel %vm521, 0, %v512
        %v528 = vrot.slane %v475, 1
        %v529 = vor.u32 %v472, %v528
        %v530 = vrot.slane %v482, 1
        %v531 = vor.u32 %v479, %v530
        %v532 = vrot.slane %v489, 1
        %v533 = vor.u32 %v486, %v532
        %v534 = vrot.slane %v496, 1
        %v535 = vor.u32 %v493, %v534
        %v536 = vrot.slane %v503, 1
        %v537 = vor.u32 %v500, %v536
        %v538 = vrot.slane %v510, 1
        %v539 = vor.u32 %v507, %v538
        %vm546 = vcmask 1047552
        %vm547 = vsmask.f32 7424
        %vm548 = vmand %vm546, %vm547
        %v549 = vsel %vm548, %v529, 0
        %v550 = vsel %vm548, %v531, 0
        %v551 = vsel %vm548, %v533, 0
        %v552 = vsel %vm548, %v535, 0
        %v553 = vsel %vm548, %v537, 0
        %v554 = vsel %vm548, %v539, 0
        %555 = vrot.lane.b32.xlu0 %v465, 8
        %v556 = vpop.permute.xlu0 %555
        %557 = vrot.lane.b32.xlu0 %v466, 8
        %v558 = vpop.permute.xlu0 %557
        %559 = vrot.lane.b32.xlu0 %v467, 8
        %v560 = vpop.permute.xlu0 %559
        %561 = vrot.lane.b32.xlu0 %v468, 8
        %v562 = vpop.permute.xlu0 %561
        %563 = vrot.lane.b32.xlu0 %v469, 8
        %v564 = vpop.permute.xlu0 %563
        %565 = vrot.lane.b32.xlu0 %v470, 8
        %v566 = vpop.permute.xlu0 %565
        %573 = vrot.lane.b32.xlu0 %v549, 16
        %v574 = vpop.permute.xlu0 %573
        %575 = vrot.lane.b32.xlu0 %v550, 16
        %v576 = vpop.permute.xlu0 %575
        %577 = vrot.lane.b32.xlu0 %v551, 16
        %v578 = vpop.permute.xlu0 %577
        %579 = vrot.lane.b32.xlu0 %v552, 16
        %v580 = vpop.permute.xlu0 %579
        %581 = vrot.lane.b32.xlu0 %v553, 16
        %v582 = vpop.permute.xlu0 %581
        %583 = vrot.lane.b32.xlu0 %v554, 16
        %v584 = vpop.permute.xlu0 %583
        %vm585 = vcmask 64512
        %v588 = vsel %vm585, %v522, %v556
        %v591 = vsel %vm585, %v523, %v558
        %v594 = vsel %vm585, %v524, %v560
        %v597 = vsel %vm585, %v525, %v562
        %v600 = vsel %vm585, %v526, %v564
        %v603 = vsel %vm585, %v527, %v566
        %vm604 = vcmask 130048
        %v606 = vsel %vm604, %v588, %v574
        %v608 = vsel %vm604, %v591, %v576
        %v610 = vsel %vm604, %v594, %v578
        %v612 = vsel %vm604, %v597, %v580
        %v614 = vsel %vm604, %v600, %v582
        %v616 = vsel %vm604, %v603, %v584
        %v617 = vld [vmem:[%s3] sm:$0xf]
        %v618 = vld [vmem:[%s3 + $0x4] sm:$0xf]
        %v619 = vld [vmem:[%s3 + $0x8] sm:$0xf]
        %s620 = scalar_lea.vmem %s3, 12
        %v621 = vld [vmem:[%s620] sm:$0xf]
        %v622 = vld [vmem:[%s620 + $0x4] sm:$0xf]
        %v623 = vld [vmem:[%s620 + $0x8] sm:$0xf]
        %v627 = vunpack.c.l.b16 %v621
        %v628 = vunpack.c.l.b16 %v622
        %v629 = vunpack.c.l.b16 %v623
        %v630 = vpack.c.b16 %v628, %v627
        %v631 = vpack.c.b16 %v629, %v629
        %vm633 = vcmask 195584
        %v634 = vsel %vm633, %v608, 0
        %v636 = vsel %vm633, %v610, 0
        %v638 = vsel %vm633, %v612, 0
        %v640 = vsel %vm633, %v614, 0
        %vm642 = vcmask 1043456
        %v644 = vsel %vm642, %v631, 0
        %646 = vmatprep.subr.bf16.mxu0 0
        %647 = vmatpush1.bf16.msra.mxu0 %v630
        %648 = vmatprep.subr.bf16.mxu0 0
        %649 = vmatpush1.bf16.msra.mxu0 %v644
        %650 = vmatprep.subr.bf16.mxu0 0
        %651 = vmatpush1.bf16.msra.mxu0 0
        %652 = vmatprep.subr.bf16.mxu0 0
        %653 = vmatpush1.bf16.msra.mxu0 0
        %654 = vmatprep.subr.bf16.mxu0 0
        %655 = vmatpush1.bf16.msra.mxu0 0
        %656 = vmatprep.subr.bf16.mxu0 0
        %657 = vmatpush1.bf16.msra.mxu0 0
        %658 = vmatprep.subr.bf16.mxu0 0
        %659 = vmatpush1.bf16.msra.mxu0 0
        %660 = vmatprep.subr.bf16.mxu0 0
        %661 = vmatpush1.bf16.msra.mxu0 0
        %662 = vmatprep.subr.bf16.mxu0 0
        %663 = vmatpush1.bf16.msra.mxu0 0
        %664 = vmatprep.subr.bf16.mxu0 0
        %665 = vmatpush1.bf16.msra.mxu0 0
        %666 = vmatprep.subr.bf16.mxu0 0
        %667 = vmatpush1.bf16.msra.mxu0 0
        %668 = vmatprep.subr.bf16.mxu0 0
        %669 = vmatpush1.bf16.msra.mxu0 0
        %670 = vmatprep.subr.bf16.mxu0 0
        %671 = vmatpush1.bf16.msra.mxu0 0
        %672 = vmatprep.subr.bf16.mxu0 0
        %673 = vmatpush1.bf16.msra.mxu0 0
        %674 = vmatprep.subr.bf16.mxu0 0
        %675 = vmatpush1.bf16.msra.mxu0 0
        %676 = vmatprep.subr.bf16.mxu0 0
        %677 = vmatpush1.bf16.msra.mxu0 0
        %678 = vmatprep.mubr.bf16.mxu0 0
        %679 = vmatmul.mubr.bf16.gmra.mrb[0].mxu0 %v634
        %v680 = vpop.f32.mrb[0].mxu0
        %v681 = vadd.f32 0.0, %v680
        %v682 = vpop.f32.mrb[0].mxu0
        %v683 = vpop.f32.mrb[0].mxu0
        %v684 = vadd.f32 0.0, %v683
        %v685 = vpop.f32.mrb[0].mxu0
        %686 = vmatprep.mubr.bf16.mxu0 0
        %687 = vmatmul.mubr.bf16.gmra.mrb[0].mxu0 %v636
        %v688 = vpop.f32.mrb[0].mxu0
        %v689 = vadd.f32 0.0, %v688
        %v690 = vpop.f32.mrb[0].mxu0
        %v691 = vpop.f32.mrb[0].mxu0
        %v692 = vadd.f32 0.0, %v691
        %v693 = vpop.f32.mrb[0].mxu0
        %694 = vmatprep.mubr.bf16.mxu0 0
        %695 = vmatmul.mubr.bf16.gmra.mrb[0].mxu0 %v638
        %v696 = vpop.f32.mrb[0].mxu0
        %v697 = vadd.f32 0.0, %v696
        %v698 = vpop.f32.mrb[0].mxu0
        %v699 = vpop.f32.mrb[0].mxu0
        %v700 = vadd.f32 0.0, %v699
        %v701 = vpop.f32.mrb[0].mxu0
        %702 = vmatprep.mubr.bf16.mxu0 0
        %703 = vmatmul.mubr.bf16.gmra.mrb[0].mxu0 %v640
        %v704 = vpop.f32.mrb[0].mxu0
        %v705 = vadd.f32 0.0, %v704
        %v706 = vpop.f32.mrb[0].mxu0
        %v707 = vpop.f32.mrb[0].mxu0
        %v708 = vadd.f32 0.0, %v707
        %v709 = vpop.f32.mrb[0].mxu0
        %710 = vdwg.mxu0
        %v714 = vunpack.c.l.b16 %v617
        %v715 = vunpack.c.l.b16 %v618
        %v716 = vunpack.c.l.b16 %v619
        %v717 = vpack.c.b16 %v715, %v714
        %v718 = vpack.c.b16 %v716, %v716
        %v720 = vsel %vm633, %v606, 0
        %v723 = vsel %vm642, %v718, 0
        %725 = vmatprep.subr.bf16.mxu0 0
        %726 = vmatpush1.bf16.msra.mxu0 %v717
        %727 = vmatprep.subr.bf16.mxu0 0
        %728 = vmatpush1.bf16.msra.mxu0 %v723
        %729 = vmatprep.subr.bf16.mxu0 0
        %730 = vmatpush1.bf16.msra.mxu0 0
        %731 = vmatprep.subr.bf16.mxu0 0
        %732 = vmatpush1.bf16.msra.mxu0 0
        %733 = vmatprep.subr.bf16.mxu0 0
        %734 = vmatpush1.bf16.msra.mxu0 0
        %735 = vmatprep.subr.bf16.mxu0 0
        %736 = vmatpush1.bf16.msra.mxu0 0
        %737 = vmatprep.subr.bf16.mxu0 0
        %738 = vmatpush1.bf16.msra.mxu0 0
        %739 = vmatprep.subr.bf16.mxu0 0
        %740 = vmatpush1.bf16.msra.mxu0 0
        %741 = vmatprep.subr.bf16.mxu0 0
        %742 = vmatpush1.bf16.msra.mxu0 0
        %743 = vmatprep.subr.bf16.mxu0 0
        %744 = vmatpush1.bf16.msra.mxu0 0
        %745 = vmatprep.subr.bf16.mxu0 0
        %746 = vmatpush1.bf16.msra.mxu0 0
        %747 = vmatprep.subr.bf16.mxu0 0
        %748 = vmatpush1.bf16.msra.mxu0 0
        %749 = vmatprep.subr.bf16.mxu0 0
        %750 = vmatpush1.bf16.msra.mxu0 0
        %751 = vmatprep.subr.bf16.mxu0 0
        %752 = vmatpush1.bf16.msra.mxu0 0
        %753 = vmatprep.subr.bf16.mxu0 0
        %754 = vmatpush1.bf16.msra.mxu0 0
        %755 = vmatprep.subr.bf16.mxu0 0
        %756 = vmatpush1.bf16.msra.mxu0 0
        %757 = vmatprep.mubr.bf16.mxu0 0
        %758 = vmatmul.mubr.bf16.gmra.mrb[0].mxu0 %v720
        %v759 = vpop.f32.mrb[0].mxu0
        %v760 = vadd.f32 %v681, %v759
        %v761 = vpop.f32.mrb[0].mxu0
        %v762 = vpop.f32.mrb[0].mxu0
        %v763 = vadd.f32 %v684, %v762
        %v764 = vpop.f32.mrb[0].mxu0
        %765 = vmatprep.mubr.bf16.mxu0 0
        %766 = vmatmul.mubr.bf16.gmra.mrb[0].mxu0 %v634
        %v767 = vpop.f32.mrb[0].mxu0
        %v768 = vadd.f32 %v689, %v767
        %v769 = vpop.f32.mrb[0].mxu0
        %v770 = vpop.f32.mrb[0].mxu0
        %v771 = vadd.f32 %v692, %v770
        %v772 = vpop.f32.mrb[0].mxu0
        %773 = vmatprep.mubr.bf16.mxu0 0
        %774 = vmatmul.mubr.bf16.gmra.mrb[0].mxu0 %v636
        %v775 = vpop.f32.mrb[0].mxu0
        %v776 = vadd.f32 %v697, %v775
        %v777 = vpop.f32.mrb[0].mxu0
        %v778 = vpop.f32.mrb[0].mxu0
        %v779 = vadd.f32 %v700, %v778
        %v780 = vpop.f32.mrb[0].mxu0
        %781 = vmatprep.mubr.bf16.mxu0 0
        %782 = vmatmul.mubr.bf16.gmra.mrb[0].mxu0 %v638
        %v783 = vpop.f32.mrb[0].mxu0
        %v784 = vadd.f32 %v705, %v783
        %v785 = vpop.f32.mrb[0].mxu0
        %v786 = vpop.f32.mrb[0].mxu0
        %v787 = vadd.f32 %v708, %v786
        %v788 = vpop.f32.mrb[0].mxu0
        %789 = vdwg.mxu0
        %s790 = scalar_lea.vmem %s3, 24
        %v791 = vld [vmem:[%s790] sm:$0xf]
        %v792 = vld [vmem:[%s790 + $0x4] sm:$0xf]
        %v793 = vld [vmem:[%s790 + $0x8] sm:$0xf]
        %v797 = vunpack.c.l.b16 %v791
        %v798 = vunpack.c.l.b16 %v792
        %v799 = vunpack.c.l.b16 %v793
        %v800 = vpack.c.b16 %v798, %v797
        %v801 = vpack.c.b16 %v799, %v799
        %v803 = vsel %vm633, %v616, 0
        %v806 = vsel %vm642, %v801, 0
        %808 = vmatprep.subr.bf16.mxu0 0
        %809 = vmatpush1.bf16.msra.mxu0 %v800
        %810 = vmatprep.subr.bf16.mxu0 0
        %811 = vmatpush1.bf16.msra.mxu0 %v806
        %812 = vmatprep.subr.bf16.mxu0 0
        %813 = vmatpush1.bf16.msra.mxu0 0
        %814 = vmatprep.subr.bf16.mxu0 0
        %815 = vmatpush1.bf16.msra.mxu0 0
        %816 = vmatprep.subr.bf16.mxu0 0
        %817 = vmatpush1.bf16.msra.mxu0 0
        %818 = vmatprep.subr.bf16.mxu0 0
        %819 = vmatpush1.bf16.msra.mxu0 0
        %820 = vmatprep.subr.bf16.mxu0 0
        %821 = vmatpush1.bf16.msra.mxu0 0
        %822 = vmatprep.subr.bf16.mxu0 0
        %823 = vmatpush1.bf16.msra.mxu0 0
        %824 = vmatprep.subr.bf16.mxu0 0
        %825 = vmatpush1.bf16.msra.mxu0 0
        %826 = vmatprep.subr.bf16.mxu0 0
        %827 = vmatpush1.bf16.msra.mxu0 0
        %828 = vmatprep.subr.bf16.mxu0 0
        %829 = vmatpush1.bf16.msra.mxu0 0
        %830 = vmatprep.subr.bf16.mxu0 0
        %831 = vmatpush1.bf16.msra.mxu0 0
        %832 = vmatprep.subr.bf16.mxu0 0
        %833 = vmatpush1.bf16.msra.mxu0 0
        %834 = vmatprep.subr.bf16.mxu0 0
        %835 = vmatpush1.bf16.msra.mxu0 0
        %836 = vmatprep.subr.bf16.mxu0 0
        %837 = vmatpush1.bf16.msra.mxu0 0
        %838 = vmatprep.subr.bf16.mxu0 0
        %839 = vmatpush1.bf16.msra.mxu0 0
        %840 = vmatprep.mubr.bf16.mxu0 0
        %841 = vmatmul.mubr.bf16.gmra.mrb[0].mxu0 %v636
        %v842 = vpop.f32.mrb[0].mxu0
        %v843 = vadd.f32 0.0, %v842
        %v844 = vpop.f32.mrb[0].mxu0
        %v845 = vpop.f32.mrb[0].mxu0
        %v846 = vadd.f32 0.0, %v845
        %v847 = vpop.f32.mrb[0].mxu0
        %848 = vmatprep.mubr.bf16.mxu0 0
        %849 = vmatmul.mubr.bf16.gmra.mrb[0].mxu0 %v638
        %v850 = vpop.f32.mrb[0].mxu0
        %v851 = vadd.f32 0.0, %v850
        %v852 = vpop.f32.mrb[0].mxu0
        %v853 = vpop.f32.mrb[0].mxu0
        %v854 = vadd.f32 0.0, %v853
        %v855 = vpop.f32.mrb[0].mxu0
        %856 = vmatprep.mubr.bf16.mxu0 0
        %857 = vmatmul.mubr.bf16.gmra.mrb[0].mxu0 %v640
        %v858 = vpop.f32.mrb[0].mxu0
        %v859 = vadd.f32 0.0, %v858
        %v860 = vpop.f32.mrb[0].mxu0
        %v861 = vpop.f32.mrb[0].mxu0
        %v862 = vadd.f32 0.0, %v861
        %v863 = vpop.f32.mrb[0].mxu0
        %864 = vmatprep.mubr.bf16.mxu0 0
        %865 = vmatmul.mubr.bf16.gmra.mrb[0].mxu0 %v803
        %v866 = vpop.f32.mrb[0].mxu0
        %v867 = vadd.f32 0.0, %v866
        %v868 = vpop.f32.mrb[0].mxu0
        %v869 = vpop.f32.mrb[0].mxu0
        %v870 = vadd.f32 0.0, %v869
        %v871 = vpop.f32.mrb[0].mxu0
        %872 = vdwg.mxu0
        %v873 = vadd.f32 %v760, %v843
        %v874 = vadd.f32 %v763, %v846
        %v875 = vadd.f32 %v768, %v851
        %v876 = vadd.f32 %v771, %v854
        %v877 = vadd.f32 %v776, %v859
        %v878 = vadd.f32 %v779, %v862
        %v879 = vadd.f32 %v784, %v867
        %v880 = vadd.f32 %v787, %v870
        %v881 = vld [vmem:[%s4] sm:$0x1]
        %v883 = vlaneseq
        %v884 = vshrl.u32 %v883, 7
        %v885 = vsub.s32 0, %v884
        %v886 = vrot.slane %v881, %v885
        %v888 = vadd.f32 %v873, %v886
        %v889 = vadd.f32 %v874, %v886
        %v890 = vadd.f32 %v875, %v886
        %v891 = vadd.f32 %v876, %v886
        %v892 = vadd.f32 %v877, %v886
        %v893 = vadd.f32 %v878, %v886
        %v894 = vadd.f32 %v879, %v886
        %v895 = vadd.f32 %v880, %v886
        %v896 = vmax.f32 %v888, 0.0
        %v897 = vmax.f32 %v889, 0.0
        %v898 = vmax.f32 %v890, 0.0
        %v899 = vmax.f32 %v891, 0.0
        %v900 = vmax.f32 %v892, 0.0
        %v901 = vmax.f32 %v893, 0.0
        %v902 = vmax.f32 %v894, 0.0
        %v903 = vmax.f32 %v895, 0.0
        %v904 = vlaneseq
        %v905 = vshrl.u32 %v904, 7
        %v906 = vadd.s32 %v905, 8
        %vm907 = vcmp.ge.s32.totalorder %v905, 1
        %vm908 = vcmp.ge.s32.totalorder %v906, 1
        %vm909 = vcmp.le.s32.totalorder %v905, 12
        %vm910 = vcmp.le.s32.totalorder %v906, 12
        %vm911 = vmand %vm907, %vm909
        %vm912 = vmand %vm908, %vm910
        %v913 = vsel %vm911, %v896, 0.0
        %v914 = vsel %vm912, %v897, 0.0
        %v915 = vsel %vm911, %v898, 0.0
        %v916 = vsel %vm912, %v899, 0.0
        %v917 = vsel %vm911, %v900, 0.0
        %v918 = vsel %vm912, %v901, 0.0
        %v919 = vsel %vm911, %v902, 0.0
        %v920 = vsel %vm912, %v903, 0.0
        %v921 = vpack.c.bf16 %v914, %v913
        %v922 = vpack.c.bf16 %v916, %v915
        %v923 = vpack.c.bf16 %v918, %v917
        %v924 = vpack.c.bf16 %v920, %v919
        %v929 = vunpack.c.l.b16 %v921
        %v930 = vunpack.c.h.b16 %v921
        %v931 = vunpack.c.l.b16 %v922
        %v932 = vunpack.c.h.b16 %v922
        %v933 = vunpack.c.l.b16 %v923
        %v934 = vunpack.c.h.b16 %v923
        %v935 = vunpack.c.l.b16 %v924
        %v936 = vunpack.c.h.b16 %v924
        %v937 = vpack.c.b16 %v929, %v929
        %v938 = vpack.c.b16 %v930, %v930
        %v939 = vpack.c.b16 %v931, %v931
        %v940 = vpack.c.b16 %v932, %v932
        %v941 = vpack.c.b16 %v933, %v933
        %v942 = vpack.c.b16 %v934, %v934
        %v943 = vpack.c.b16 %v935, %v935
        %v944 = vpack.c.b16 %v936, %v936
        %vm953 = vcmask 125952
        %954 = vst.msk [vmem:[%s340] sm:$0xf] %vm953, %v937
        %955 = vst.msk [vmem:[%s340 + $0x4] sm:$0xf] %vm953, %v938
        %956 = vst.msk [vmem:[%s340 + $0x8] sm:$0xf] %vm953, %v939
        %957 = vst.msk [vmem:[%s340 + $0xc] sm:$0xf] %vm953, %v940
        %958 = vst.msk [vmem:[%s340 + $0x10] sm:$0xf] %vm953, %v941
        %959 = vst.msk [vmem:[%s340 + $0x14] sm:$0xf] %vm953, %v942
        %960 = vst.msk [vmem:[%s340 + $0x18] sm:$0xf] %vm953, %v943
        %961 = vst.msk [vmem:[%s340 + $0x1c] sm:$0xf] %vm953, %v944
        %s962 = sand.u32 %s183, 1
        %s963 = scalar_lea.sflag [#allocation3], %s962
        %s964 = sand.u32 %s183, 1
        %s965 = smul.addr %s964, 32
        %s966 = scalar_lea.vmem [#allocation2], %s965
        // Predicated region
        $region41: #{tpu_custom_call.1} parent=39 // pred_check
          %p967 = pneg %p193
        $region42: #{tpu_custom_call.1} parent=39 // pred_check_branch
          %969 = sbr.rel (%p967) target = $region44
        $region43: #{tpu_custom_call.1} parent=39 // pred_region
          %s970 = smul.u32 4, %s24
          %s972 = ssub.s32 512, 512
          %973 = vsyncadd %s963, %s972
          %s974 = smul.addr %s970, 2
          %s975 = smul.addr %s23, 32
          %s976 = sadd.s32 %s974, %s975
          %s977 = smul.addr %s976, 64
          %s978 = scalar_lea.hbm %s5, %s977
          %s979 = sshll.u32 %s966, 4
          %s980 = int_to_ptr.vmem [resolvable:$true] %s979
          %985 = dma.vmem_to_hbm [thread:$0]  %s980, 512, %s978, %s963, 64, 64, 4
        $region44: #{tpu_custom_call.1} parent=39 // pred_fallthru
          _
      $region40: #{tpu_custom_call.1} parent=5 // pred_fallthru
        _
      %p986 = scmp.le.s32.totalorder 2, %s14
      // Predicated region
      $region45: #{tpu_custom_call.1} parent=5 // pred_check
        %p987 = pneg %p986
      $region46: #{tpu_custom_call.1} parent=5 // pred_check_branch
        %989 = sbr.rel (%p987) target = $region48
      $region47: #{tpu_custom_call.1} parent=5 // pred_region
        %s990 = ssub.s32 %s14, 2
        // Predicated region
        $region49: #{tpu_custom_call.1} parent=47 // pred_check
          %p991 = pneg %p199
        $region50: #{tpu_custom_call.1} parent=47 // pred_check_branch
          %993 = sbr.rel (%p991) target = $region52
        $region51: #{tpu_custom_call.1} parent=47 // pred_region
          %s994 = sand.u32 %s184, 1
          %s995 = scalar_lea.sflag [#allocation3], %s994
          %s996 = sand.u32 %s184, 1
          %s997 = smul.addr %s996, 32
          %s998 = scalar_lea.vmem [#allocation2], %s997
          %999 = dma.done %s995, 512
        $region52: #{tpu_custom_call.1} parent=47 // pred_fallthru
          _
      $region48: #{tpu_custom_call.1} parent=5 // pred_fallthru
        _
    $region6: #{tpu_custom_call.1} parent=1 // loop_footer
      %s18 = sadd.s32 1, %s14
    $region7: #{tpu_custom_call.1} parent=1 // loop_footer_branch
      %13 = sbr.rel target = $region3
    $region8: #{tpu_custom_call.1} parent=1 // loop_exit
      _
    %1000 = vsyncpa [#allocation3], 1
    %s1001 = scalar_lea.sflag [#allocation3], 1
    %1002 = vsyncpa %s1001, 1

</llo_original>
